<compile_context>
chip_gen: v6e
topology: v6e:2x2x1
jax: 0.10.0
libtpu: 0.0.40
codegen_flags: <defaults>
</compile_context>

<pallas_src>
import functools

import jax
import jax.numpy as jnp
from jax import lax
from jax.experimental import pallas as pl
from jax.experimental.pallas import tpu as pltpu

_IGNORE_INDEX = -100  # PyTorch nn.CrossEntropyLoss default


def _ce_kernel(logits_ref, labels_ref, loss_ref):
    # logits_ref: (1, C, TN)  native dtype (f32/bf16) tile in VMEM
    # labels_ref: (1, 1, TN)  int32
    # loss_ref:   (1, 1, TN)  float32
    x = logits_ref[...].astype(jnp.float32)              # (1, C, TN)
    lbl = labels_ref[...]                                 # (1, 1, TN) int32

    # numerically stable log-sum-exp over the class (sublane) axis
    m = jnp.max(x, axis=1, keepdims=True)                 # (1, 1, TN)   XLU
    e = jnp.exp(x - m)                                    # (1, C, TN)   EUP
    s = jnp.sum(e, axis=1, keepdims=True)                 # (1, 1, TN)   XLU
    lse = m + jnp.log(s)                                  # (1, 1, TN)   EUP

    # gather logits[label] via one-hot select over the class axis
    class_iota = lax.broadcasted_iota(jnp.int32, x.shape, 1)      # (1, C, TN)
    picked = jnp.sum(jnp.where(class_iota == lbl, x, 0.0),
                     axis=1, keepdims=True)                # (1, 1, TN)

    loss = lse - picked
    # PyTorch ignore_index semantics (reduction='none' -> 0 at ignored pixels)
    loss = jnp.where(lbl == _IGNORE_INDEX, 0.0, loss)
    loss_ref[...] = loss.astype(loss_ref.dtype)


def _choose_tile(hw, c, itemsize, target_block_bytes, max_tn):
    """Pixels-per-block along the lane axis (static, trace-time)."""
    tn = target_block_bytes // max(c * itemsize, 1)
    tn = max(128, min(tn, max_tn))
    tn = (tn // 128) * 128
    if hw <= tn:
        return hw      # full extent — always a legal block shape
    return tn


@functools.partial(jax.jit, static_argnames=("target_block_bytes", "max_tn"))
def cross_entropy_loss(logits, labels, *,
                       target_block_bytes=2 * 1024 * 1024, max_tn=65536):
    """logits: (N, C, H, W); labels: (N, 1, H, W) int -> (N, 1, H, W) float32."""
    n, c, h, w = logits.shape
    hw = h * w

    # Pure reshapes of NCHW — no transpose, no dtype cast of logits, no padding copy.
    logits_r = logits.reshape(n, c, hw)
    labels_r = labels.reshape(n, 1, hw).astype(jnp.int32)

    itemsize = jnp.dtype(logits.dtype).itemsize
    tn = _choose_tile(hw, c, itemsize, target_block_bytes, max_tn)
    grid = (n, pl.cdiv(hw, tn))

    loss = pl.pallas_call(
        _ce_kernel,
        out_shape=jax.ShapeDtypeStruct((n, 1, hw), jnp.float32),
        grid_spec=pltpu.PrefetchScalarGridSpec(
            num_scalar_prefetch=0,
            grid=grid,
            in_specs=[
                pl.BlockSpec((1, c, tn), lambda b, j: (b, 0, j)),
                pl.BlockSpec((1, 1, tn), lambda b, j: (b, 0, j)),
            ],
            out_specs=pl.BlockSpec((1, 1, tn), lambda b, j: (b, 0, j)),
        ),
        compiler_params=pltpu.CompilerParams(
            dimension_semantics=("parallel", "parallel")),
    )(logits_r, labels_r)

    return loss.reshape(n, 1, h, w)


def _reference(logits, labels):
    # pure-JAX reference for validation (matches F.cross_entropy, reduction='none')
    n, c, h, w = logits.shape
    x = logits.astype(jnp.float32)
    lbl = labels.reshape(n, h, w)
    safe_lbl = jnp.where(lbl == _IGNORE_INDEX, 0, lbl)
    lse = jax.scipy.special.logsumexp(x, axis=1)                            # (N, H, W)
    picked = jnp.take_along_axis(x, safe_lbl[:, None, :, :], axis=1)[:, 0]  # (N, H, W)
    loss = jnp.where(lbl == _IGNORE_INDEX, 0.0, lse - picked)
    return loss[:, None, :, :]


if __name__ == "__main__":
    key = jax.random.PRNGKey(0)
    k1, k2, k3 = jax.random.split(key, 3)

    N, C, H, W = 2, 4, 16, 16
    logits = jax.random.normal(k1, (N, C, H, W), dtype=jnp.float32)
    labels = jax.random.randint(k2, (N, 1, H, W), 0, C, dtype=jnp.int32)

    out = cross_entropy_loss(logits, labels)
    out = jax.block_until_ready(out)

    ref = _reference(logits, labels)
    assert out.shape == (N, 1, H, W), out.shape
    assert jnp.allclose(out, ref, atol=1e-5, rtol=1e-5), "mismatch vs reference (f32)"

    # bf16 logits path: native-dtype HBM read, f32 math inside the kernel.
    logits_bf16 = logits.astype(jnp.bfloat16)
    out_bf16 = jax.block_until_ready(cross_entropy_loss(logits_bf16, labels))
    ref_bf16 = _reference(logits_bf16, labels)
    assert jnp.allclose(out_bf16, ref_bf16, atol=3e-2, rtol=3e-2), "mismatch vs reference (bf16)"

    # ignore_index (-100) path: ignored pixels must contribute exactly 0.
    ign_mask = jax.random.bernoulli(k3, 0.1, (N, 1, H, W))
    labels_ign = jnp.where(ign_mask, _IGNORE_INDEX, labels).astype(jnp.int32)
    out_ign = jax.block_until_ready(cross_entropy_loss(logits, labels_ign))
    ref_ign = _reference(logits, labels_ign)
    assert jnp.allclose(out_ign, ref_ign, atol=1e-5, rtol=1e-5), "mismatch vs reference (ignore_index)"

    print("KERNEL_OK")
</pallas_src>

<mosaic_0001>
module attributes {stable_mosaic.version = 11 : i64} {
  func.func @_ce_kernel(%arg0: i32, %arg1: i32, %arg2: memref<1x4x256xf32, #tpu.memory_space<vmem>>, %arg3: memref<1x1x256xi32, #tpu.memory_space<vmem>>, %arg4: memref<1x1x256xf32, #tpu.memory_space<vmem>>) attributes {dimension_semantics = [#tpu.dimension_semantics<parallel>, #tpu.dimension_semantics<parallel>], iteration_bounds = array<i64: 2, 1>, scalar_prefetch = 0 : i64, scratch_operands = 0 : i64, tpu.core_type = #tpu.core_type<tc>, window_params = [{transform_indices = @transform_0, window_bounds = array<i64: 1, 4, 256>}, {transform_indices = @transform_1, window_bounds = array<i64: 1, 1, 256>}, {transform_indices = @transform_2, window_bounds = array<i64: 1, 1, 256>}]} {
    %c0 = arith.constant 0 : index
    %c0_0 = arith.constant 0 : index
    %c0_1 = arith.constant 0 : index
    %0 = vector.load %arg2[%c0, %c0_0, %c0_1] : memref<1x4x256xf32, #tpu.memory_space<vmem>>, vector<1x4x256xf32>
    %c0_2 = arith.constant 0 : index
    %c0_3 = arith.constant 0 : index
    %c0_4 = arith.constant 0 : index
    %1 = vector.load %arg3[%c0_2, %c0_3, %c0_4] : memref<1x1x256xi32, #tpu.memory_space<vmem>>, vector<1x1x256xi32>
    %cst = arith.constant dense<0xFF800000> : vector<1x256xf32>
    %2 = vector.multi_reduction <maximumf>, %0, %cst [1] : vector<1x4x256xf32> to vector<1x256xf32>
    %3 = vector.shape_cast %2 : vector<1x256xf32> to vector<1x1x256xf32>
    %4 = vector.broadcast %3 : vector<1x1x256xf32> to vector<1x4x256xf32>
    %5 = arith.subf %0, %4 : vector<1x4x256xf32>
    %6 = math.exp %5 : vector<1x4x256xf32>
    %cst_5 = arith.constant dense<0.000000e+00> : vector<1x256xf32>
    %7 = vector.multi_reduction <add>, %6, %cst_5 [1] : vector<1x4x256xf32> to vector<1x256xf32>
    %8 = vector.shape_cast %7 : vector<1x256xf32> to vector<1x1x256xf32>
    %9 = math.log %8 : vector<1x1x256xf32>
    %10 = arith.addf %3, %9 : vector<1x1x256xf32>
    %11 = tpu.iota {dimensions = array<i32: 1>} : vector<1x4x256xi32>
    %12 = vector.broadcast %1 : vector<1x1x256xi32> to vector<1x4x256xi32>
    %13 = arith.cmpi eq, %11, %12 : vector<1x4x256xi32>
    %cst_6 = arith.constant 0.000000e+00 : f32
    %14 = vector.broadcast %cst_6 : f32 to vector<1x4x256xf32>
    %15 = arith.select %13, %0, %14 : vector<1x4x256xi1>, vector<1x4x256xf32>
    %cst_7 = arith.constant dense<0.000000e+00> : vector<1x256xf32>
    %16 = vector.multi_reduction <add>, %15, %cst_7 [1] : vector<1x4x256xf32> to vector<1x256xf32>
    %17 = vector.shape_cast %16 : vector<1x256xf32> to vector<1x1x256xf32>
    %18 = arith.subf %10, %17 : vector<1x1x256xf32>
    %c-100_i32 = arith.constant -100 : i32
    %19 = vector.broadcast %c-100_i32 : i32 to vector<1x1x256xi32>
    %20 = arith.cmpi eq, %1, %19 : vector<1x1x256xi32>
    %cst_8 = arith.constant 0.000000e+00 : f32
    %21 = vector.broadcast %cst_8 : f32 to vector<1x1x256xf32>
    %22 = arith.select %20, %21, %18 : vector<1x1x256xi1>, vector<1x1x256xf32>
    %c0_9 = arith.constant 0 : index
    %c0_10 = arith.constant 0 : index
    %c0_11 = arith.constant 0 : index
    %23 = vector.load %arg4[%c0_9, %c0_10, %c0_11] : memref<1x1x256xf32, #tpu.memory_space<vmem>>, vector<1x1x256xf32>
    tpu.vector_store %arg4[%c0_9, %c0_10, %c0_11], %22 {strides = array<i32>} : memref<1x1x256xf32, #tpu.memory_space<vmem>>, vector<1x1x256xf32>,
    return
  }
  func.func @transform_0(%arg0: i32, %arg1: i32) -> (i32, i32, i32) {
    %c0_i32 = arith.constant 0 : i32
    %c0_i32_0 = arith.constant 0 : i32
    return %arg0, %c0_i32, %arg1 : i32, i32, i32
  }
  func.func @transform_1(%arg0: i32, %arg1: i32) -> (i32, i32, i32) {
    %c0_i32 = arith.constant 0 : i32
    %c0_i32_0 = arith.constant 0 : i32
    return %arg0, %c0_i32, %arg1 : i32, i32, i32
  }
  func.func @transform_2(%arg0: i32, %arg1: i32) -> (i32, i32, i32) {
    %c0_i32 = arith.constant 0 : i32
    %c0_i32_0 = arith.constant 0 : i32
    return %arg0, %c0_i32, %arg1 : i32, i32, i32
  }
}

</mosaic_0001>

<llo_original>
// kernel: cross_entropy_loss.1
$region0: #{cross_entropy_loss.1}
  #allocation0 [shape = 'u32[]', space=smem, size = 0x4, offset = 0x4, fixed_abs, tag = 'smem constant byte address 0x4 - core index']
  #allocation1 [shape = 'u32[144,128]{1,0:T(1,128)}', space=vmem, size = 0x12000, scoped, tag = 'internal scratch']
  %s0 = inlined_call_operand.vmem [shape: f32[2,4,256], index: 0, kind: input, shape index: {}]
  %s1 = inlined_call_operand.vmem [shape: s32[2,1,256], index: 1, kind: input, shape index: {}]
  %s2 = inlined_call_operand.vmem [shape: f32[2,1,256], index: 2, kind: output, shape index: {}]
  %s3 = sld [smem:[#allocation0]]
  $region41: #{cross_entropy_loss.1} parent=0
    _
  %s5 = ssub.s32 1, %s3
  %s6 = scalar_select 0, %s5, %s3
  loop: start=0, step=1, limit=4
  $region2: #{cross_entropy_loss.1} parent=0 // loop_pre_header
    _
  $region3: #{cross_entropy_loss.1} parent=0 // loop_header
    %s8 = sphi 0, %s12
    %p9 = scmp.ge.s32.totalorder %s8, 4
    %s15 = sphi 0, %s27
    %s16 = sphi 0, %s23
    %s17 = sphi 0, %s15
    %s18 = sphi 0, %s16
    %s19 = sphi 0, %s17
    %s20 = sphi 0, %s18
    %s32 = sphi 0, %s34
    %s35 = sphi 0, %s32
    %s36 = sphi 0, %s35
    %s52 = sphi 0, %s36
    %s60 = sphi 0, %s62
    %s63 = sphi 0, %s60
    %s64 = sphi 0, %s63
    %s80 = sphi 0, %s64
    %s88 = sphi 0, %s90
    %s91 = sphi 0, %s88
    %s92 = sphi 0, %s91
    %s108 = sphi 0, %s92
  $region4: #{cross_entropy_loss.1} parent=0 // loop_header_branch
    %11 = sbr.rel (%p9) target = $region8
  $region5: #{cross_entropy_loss.1} parent=0 // loop_body
    %s13 = ssub.s32 %s8, 1
    %s14 = ssub.s32 %s8, 2
    %s21 = sadd.s32 1, %s16
    %p22 = scmp.ge.s32.totalorder %s21, 1
    %s23 = scalar_select %p22, 0, %s21
    %s24 = sadd.s32 1, %s15
    %s25 = scalar_select %p22, %s24, %s15
    %p26 = scmp.ge.s32.totalorder %s25, 2
    %s27 = scalar_select %p26, 0, %s25
    %s28 = ssub.s32 %s15, %s27
    %s29 = ssub.s32 %s16, %s23
    %s30 = sor.u32 %s28, %s29
    %p31 = scmp.eq.s32.totalorder %s30, 0
    %s33 = sadd.s32 %s32, 1
    %s34 = scalar_select %p31, %s32, %s33
    %p37 = pneg %p31
    %p38 = scmp.eq.s32.totalorder %s8, 1
    %p39 = por %p37, %p38
    %p40 = scmp.ne.s32.totalorder %s32, %s35
    %p41 = scmp.eq.s32.totalorder %s8, 0
    %p42 = por %p40, %p41
    %p43 = scmp.ne.s32.totalorder %s32, %s35
    %p44 = scmp.eq.s32.totalorder %s13, 1
    %p45 = por %p43, %p44
    %p46 = scmp.ne.s32.totalorder %s35, %s36
    %p47 = scmp.eq.s32.totalorder %s13, 0
    %p48 = por %p46, %p47
    %p49 = scmp.ne.s32.totalorder %s35, %s36
    %p50 = scmp.eq.s32.totalorder %s14, 1
    %p51 = por %p49, %p50
    %p53 = scmp.ne.s32.totalorder %s36, %s52
    %p54 = scmp.eq.s32.totalorder %s14, 0
    %p55 = por %p53, %p54
    %s56 = ssub.s32 %s15, %s27
    %s57 = ssub.s32 %s16, %s23
    %s58 = sor.u32 %s56, %s57
    %p59 = scmp.eq.s32.totalorder %s58, 0
    %s61 = sadd.s32 %s60, 1
    %s62 = scalar_select %p59, %s60, %s61
    %p65 = pneg %p59
    %p66 = scmp.eq.s32.totalorder %s8, 1
    %p67 = por %p65, %p66
    %p68 = scmp.ne.s32.totalorder %s60, %s63
    %p69 = scmp.eq.s32.totalorder %s8, 0
    %p70 = por %p68, %p69
    %p71 = scmp.ne.s32.totalorder %s60, %s63
    %p72 = scmp.eq.s32.totalorder %s13, 1
    %p73 = por %p71, %p72
    %p74 = scmp.ne.s32.totalorder %s63, %s64
    %p75 = scmp.eq.s32.totalorder %s13, 0
    %p76 = por %p74, %p75
    %p77 = scmp.ne.s32.totalorder %s63, %s64
    %p78 = scmp.eq.s32.totalorder %s14, 1
    %p79 = por %p77, %p78
    %p81 = scmp.ne.s32.totalorder %s64, %s80
    %p82 = scmp.eq.s32.totalorder %s14, 0
    %p83 = por %p81, %p82
    %s84 = ssub.s32 %s15, %s27
    %s85 = ssub.s32 %s16, %s23
    %s86 = sor.u32 %s84, %s85
    %p87 = scmp.eq.s32.totalorder %s86, 0
    %s89 = sadd.s32 %s88, 1
    %s90 = scalar_select %p87, %s88, %s89
    %p93 = pneg %p87
    %p94 = scmp.eq.s32.totalorder %s8, 1
    %p95 = por %p93, %p94
    %p96 = scmp.ne.s32.totalorder %s88, %s91
    %p97 = scmp.eq.s32.totalorder %s8, 0
    %p98 = por %p96, %p97
    %p99 = scmp.ne.s32.totalorder %s88, %s91
    %p100 = scmp.eq.s32.totalorder %s13, 1
    %p101 = por %p99, %p100
    %p102 = scmp.ne.s32.totalorder %s91, %s92
    %p103 = scmp.eq.s32.totalorder %s13, 0
    %p104 = por %p102, %p103
    %p105 = scmp.ne.s32.totalorder %s91, %s92
    %p106 = scmp.eq.s32.totalorder %s14, 1
    %p107 = por %p105, %p106
    %p109 = scmp.ne.s32.totalorder %s92, %s108
    %p110 = scmp.eq.s32.totalorder %s14, 0
    %p111 = por %p109, %p110
    %p112 = scmp.le.s32.totalorder 1, %s8
    %p113 = scmp.lt.s32.totalorder %s8, 3
    %p114 = pnand %p112, %p113
    %p115 = pneg %p114
    // Predicated region
    $region9: #{cross_entropy_loss.1} parent=5 // pred_check
      _
    $region10: #{cross_entropy_loss.1} parent=5 // pred_check_branch
      %117 = sbr.rel (%p114) target = $region12
    $region11: #{cross_entropy_loss.1} parent=5 // pred_region
      %s118 = ssub.s32 %s8, 1
    $region12: #{cross_entropy_loss.1} parent=5 // pred_fallthru
      _
    %p119 = scmp.lt.s32.totalorder %s8, 2
    // Predicated region
    $region13: #{cross_entropy_loss.1} parent=5 // pred_check
      %p120 = pneg %p119
    $region14: #{cross_entropy_loss.1} parent=5 // pred_check_branch
      %122 = sbr.rel (%p120) target = $region16
    $region15: #{cross_entropy_loss.1} parent=5 // pred_region
      // Predicated region
      $region17: #{cross_entropy_loss.1} parent=15 // pred_check
        %p123 = pneg %p42
      $region18: #{cross_entropy_loss.1} parent=15 // pred_check_branch
        %125 = sbr.rel (%p123) target = $region20
      $region19: #{cross_entropy_loss.1} parent=15 // pred_region
        %s126 = smul.u32 2, %s16
        %p127 = scmp.lt.s32.totalorder %s15, 1
        %s128 = scalar_select %p127, %s15, 1
        %p129 = scmp.lt.s32.totalorder %s126, 1
        %s130 = scalar_select %p129, %s126, 1
        %s131 = smul.addr %s128, 2
        %s132 = sadd.s32 %s130, %s131
        %s133 = smul.addr %s132, 4
        %s134 = scalar_lea.vmem %s0, %s133
        %s135 = smul.u32 2, %s16
      $region20: #{cross_entropy_loss.1} parent=15 // pred_fallthru
        _
      // Predicated region
      $region21: #{cross_entropy_loss.1} parent=15 // pred_check
        %p136 = pneg %p70
      $region22: #{cross_entropy_loss.1} parent=15 // pred_check_branch
        %138 = sbr.rel (%p136) target = $region24
      $region23: #{cross_entropy_loss.1} parent=15 // pred_region
        %s139 = smul.u32 2, %s16
        %p140 = scmp.lt.s32.totalorder %s15, 1
        %s141 = scalar_select %p140, %s15, 1
        %p142 = scmp.lt.s32.totalorder %s139, 1
        %s143 = scalar_select %p142, %s139, 1
        %s144 = smul.addr %s141, 2
        %s145 = sadd.s32 %s143, %s144
        %s146 = scalar_lea.vmem %s1, %s145
        %s147 = smul.u32 2, %s16
      $region24: #{cross_entropy_loss.1} parent=15 // pred_fallthru
        _
    $region16: #{cross_entropy_loss.1} parent=5 // pred_fallthru
      _
    %p148 = scmp.le.s32.totalorder 1, %s8
    %p149 = scmp.lt.s32.totalorder %s8, 3
    %p150 = pnand %p148, %p149
    %p151 = pneg %p150
    // Predicated region
    $region25: #{cross_entropy_loss.1} parent=5 // pred_check
      _
    $region26: #{cross_entropy_loss.1} parent=5 // pred_check_branch
      %153 = sbr.rel (%p150) target = $region28
    $region27: #{cross_entropy_loss.1} parent=5 // pred_region
      %s154 = ssub.s32 %s8, 1
      %s155 = smul.u32 2, %s18
      %p156 = scmp.lt.s32.totalorder %s17, 1
      %s157 = scalar_select %p156, %s17, 1
      %p158 = scmp.lt.s32.totalorder %s155, 1
      %s159 = scalar_select %p158, %s155, 1
      %s160 = smul.addr %s157, 2
      %s161 = sadd.s32 %s159, %s160
      %s162 = smul.addr %s161, 4
      %s163 = scalar_lea.vmem %s0, %s162
      %p164 = pneg %p48
      %p165 = pneg %p45
      %s166 = smul.u32 2, %s18
      %p167 = scmp.lt.s32.totalorder %s17, 1
      %s168 = scalar_select %p167, %s17, 1
      %p169 = scmp.lt.s32.totalorder %s166, 1
      %s170 = scalar_select %p169, %s166, 1
      %s171 = smul.addr %s168, 2
      %s172 = sadd.s32 %s170, %s171
      %s173 = scalar_lea.vmem %s1, %s172
      %p174 = pneg %p76
      %p175 = pneg %p73
      %p176 = pneg %p104
      %p177 = pneg %p101
      %s178 = smul.u32 2, %s18
      %p179 = scmp.lt.s32.totalorder %s17, 1
      %s180 = scalar_select %p179, %s17, 1
      %p181 = scmp.lt.s32.totalorder %s178, 1
      %s182 = scalar_select %p181, %s178, 1
      %s183 = smul.addr %s180, 2
      %s184 = sadd.s32 %s182, %s183
      %s185 = scalar_lea.vmem %s2, %s184
      %s186 = smul.u32 2, %s18
      %p187 = scmp.lt.s32.totalorder %s17, 1
      %s188 = scalar_select %p187, %s17, 1
      %p189 = scmp.lt.s32.totalorder %s186, 1
      %s190 = scalar_select %p189, %s186, 1
      %s191 = smul.addr %s188, 2
      %s192 = sadd.s32 %s190, %s191
      %s193 = smul.addr %s192, 4
      %s194 = scalar_lea.vmem %s0, %s193
      %s195 = smul.u32 2, %s18
      %s196 = smul.u32 2, %s18
      %p197 = scmp.lt.s32.totalorder %s17, 1
      %s198 = scalar_select %p197, %s17, 1
      %p199 = scmp.lt.s32.totalorder %s196, 1
      %s200 = scalar_select %p199, %s196, 1
      %s201 = smul.addr %s198, 2
      %s202 = sadd.s32 %s200, %s201
      %s203 = scalar_lea.vmem %s1, %s202
      %s204 = smul.u32 2, %s18
      %s205 = smul.u32 2, %s18
      %p206 = scmp.lt.s32.totalorder %s17, 1
      %s207 = scalar_select %p206, %s17, 1
      %p208 = scmp.lt.s32.totalorder %s205, 1
      %s209 = scalar_select %p208, %s205, 1
      %s210 = smul.addr %s207, 2
      %s211 = sadd.s32 %s209, %s210
      %s212 = scalar_lea.vmem %s2, %s211
      %s213 = smul.u32 2, %s18
      %v214 = vld [vmem:[%s194] sm:$0xff]
      %v215 = vld [vmem:[%s203] sm:$0x3]
      %v217 = vcombine.high %v214, %v214
      %vm219 = vcmask 1043456
      %v220 = vsel %vm219, %v214, -inf
      %v221 = vrot.slane %v220, 4
      %v222 = vmax.f32 %v220, %v221
      %v223 = vrot.slane %v222, 2
      %v224 = vmax.f32 %v222, %v223
      %v225 = vrot.slane %v224, 1
      %v226 = vmax.f32 %v224, %v225
      %v227 = vsel %vm219, %v217, -inf
      %v228 = vrot.slane %v227, 4
      %v229 = vmax.f32 %v227, %v228
      %v230 = vrot.slane %v229, 2
      %v231 = vmax.f32 %v229, %v230
      %v232 = vrot.slane %v231, 1
      %v233 = vmax.f32 %v231, %v232
      %v236 = vcombine.low %v226, %v233
      %v238 = vsub.f32 %v214, %v236
      %v239 = vmul.f32 %v238, 1.442695
      %v240 = vpow.pop %v239
      %v242 = vcombine.high %v240, %v240
      %v244 = vsel %vm219, %v240, 0.0
      %v245 = vrot.slane %v244, 4
      %v246 = vadd.f32 %v244, %v245
      %v247 = vrot.slane %v246, 2
      %v248 = vadd.f32 %v246, %v247
      %v249 = vrot.slane %v248, 1
      %v250 = vadd.f32 %v248, %v249
      %v251 = vsel %vm219, %v242, 0.0
      %v252 = vrot.slane %v251, 4
      %v253 = vadd.f32 %v251, %v252
      %v254 = vrot.slane %v253, 2
      %v255 = vadd.f32 %v253, %v254
      %v256 = vrot.slane %v255, 1
      %v257 = vadd.f32 %v255, %v256
      %v258 = vlog2.pop %v250
      %v259 = vmul.f32 %v258, 0.6931472
      %v260 = vlog2.pop %v257
      %v261 = vmul.f32 %v260, 0.6931472
      %v262 = vadd.f32 %v226, %v259
      %v263 = vadd.f32 %v233, %v261
      %v264 = vlaneseq
      %v265 = vshrl.u32 %v264, 7
      %v266 = vlaneseq
      %v267 = vshrl.u32 %v266, 7
      %v268 = vsub.s32 0, %v267
      %v269 = vrot.slane %v215, %v268
      %v270 = vlaneseq
      %v271 = vshrl.u32 %v270, 7
      %v272 = vsub.s32 1, %v271
      %v273 = vrot.slane %v215, %v272
      %vm274 = vcmp.eq.s32.totalorder %v265, %v269
      %vm275 = vcmp.eq.s32.totalorder %v265, %v273
      %v276 = vsel %vm274, %v214, 0.0
      %v277 = vsel %vm275, %v217, 0.0
      %v278 = vsel %vm219, %v276, 0.0
      %v279 = vrot.slane %v278, 4
      %v280 = vadd.f32 %v278, %v279
      %v281 = vrot.slane %v280, 2
      %v282 = vadd.f32 %v280, %v281
      %v283 = vrot.slane %v282, 1
      %v284 = vadd.f32 %v282, %v283
      %v285 = vsel %vm219, %v277, 0.0
      %v286 = vrot.slane %v285, 4
      %v287 = vadd.f32 %v285, %v286
      %v288 = vrot.slane %v287, 2
      %v289 = vadd.f32 %v287, %v288
      %v290 = vrot.slane %v289, 1
      %v291 = vadd.f32 %v289, %v290
      %v292 = vsub.f32 %v262, %v284
      %v293 = vsub.f32 %v263, %v291
      %vm294 = vcmp.eq.s32.totalorder %v215, 4294967196
      %v297 = vcombine.low %v292, %v293
      %v299 = vunpack.c.l.s4 1966171168
      %v300 = vunpack.c.0.s8 %v299
      %v301 = vlaneseq
      %v302 = vshrl.u32 %v301, 7
      %v303 = vsub.s32 %v300, %v302
      %v304 = vrot.slane %v297, %v303
      %v306 = vunpack.c.l.s4 1966171168
      %v307 = vunpack.c.0.s8 %v306
      %v308 = vlaneseq
      %v309 = vshrl.u32 %v308, 7
      %v310 = vsub.s32 %v307, %v309
      %v311 = vrot.slane %v304, %v310
      %v313 = vsel %vm294, 0.0, %v311
      %v314 = vlaneseq
      %vm315 = vcmp.ge.s32.totalorder %v314, 0
      %vm316 = vcmp.lt.s32.totalorder %v314, 256
      %vm317 = vmand %vm315, %vm316
      %318 = vst.msk [vmem:[%s212] sm:$0x3] %vm317, %v313
      %s319 = smul.u32 2, %s18
      %p320 = scmp.lt.s32.totalorder %s17, 1
      %s321 = scalar_select %p320, %s17, 1
      %p322 = scmp.lt.s32.totalorder %s319, 1
      %s323 = scalar_select %p322, %s319, 1
      %s324 = smul.addr %s321, 2
      %s325 = sadd.s32 %s323, %s324
      %s326 = scalar_lea.vmem %s2, %s325
      // Predicated region
      $region29: #{cross_entropy_loss.1} parent=27 // pred_check
        %p327 = pneg %p101
      $region30: #{cross_entropy_loss.1} parent=27 // pred_check_branch
        %329 = sbr.rel (%p327) target = $region32
      $region31: #{cross_entropy_loss.1} parent=27 // pred_region
        %s330 = smul.u32 2, %s18
      $region32: #{cross_entropy_loss.1} parent=27 // pred_fallthru
        _
    $region28: #{cross_entropy_loss.1} parent=5 // pred_fallthru
      _
    %p331 = scmp.le.s32.totalorder 2, %s8
    // Predicated region
    $region33: #{cross_entropy_loss.1} parent=5 // pred_check
      %p332 = pneg %p331
    $region34: #{cross_entropy_loss.1} parent=5 // pred_check_branch
      %334 = sbr.rel (%p332) target = $region36
    $region35: #{cross_entropy_loss.1} parent=5 // pred_region
      %s335 = ssub.s32 %s8, 2
      // Predicated region
      $region37: #{cross_entropy_loss.1} parent=35 // pred_check
        %p336 = pneg %p107
      $region38: #{cross_entropy_loss.1} parent=35 // pred_check_branch
        %338 = sbr.rel (%p336) target = $region40
      $region39: #{cross_entropy_loss.1} parent=35 // pred_region
        %s339 = smul.u32 2, %s20
        %p340 = scmp.lt.s32.totalorder %s19, 1
        %s341 = scalar_select %p340, %s19, 1
        %p342 = scmp.lt.s32.totalorder %s339, 1
        %s343 = scalar_select %p342, %s339, 1
        %s344 = smul.addr %s341, 2
        %s345 = sadd.s32 %s343, %s344
        %s346 = scalar_lea.vmem %s2, %s345
      $region40: #{cross_entropy_loss.1} parent=35 // pred_fallthru
        _
    $region36: #{cross_entropy_loss.1} parent=5 // pred_fallthru
      _
  $region6: #{cross_entropy_loss.1} parent=0 // loop_footer
    %s12 = sadd.s32 1, %s8
  $region7: #{cross_entropy_loss.1} parent=0 // loop_footer_branch
    %7 = sbr.rel target = $region3
  $region8: #{cross_entropy_loss.1} parent=0 // loop_exit
    _

</llo_original>
